<compile_context>
chip_gen: v5e
topology: v5e:2x2
jax: 0.10.0
libtpu: 0.0.40
codegen_flags: <defaults>
</compile_context>

<pallas_src>
import numpy as np
import jax
import jax.numpy as jnp
from jax.experimental import pallas as pl
from jax.experimental.pallas import tpu as pltpu

MATMUL_DTYPE = jnp.bfloat16   # MXU operand dtype (accumulation stays f32)


def _round_up(v, m):
    return (v + m - 1) // m * m


def _cdiv(a, b):
    return (a + b - 1) // b


# ----------------------------------------------------------------------------
# Sinc lowpass filter -- verbatim math from the provided PyTorch module source
# (including the 0.08*cos(4*pi*M) term exactly as written in the module).
# ----------------------------------------------------------------------------
def build_sinc_filter(kernel_size, cutoff):
    assert kernel_size % 2 == 1
    M = kernel_size - 1
    filt = np.zeros(kernel_size, dtype=np.float64)
    for i in range(kernel_size):
        if i == M // 2:
            filt[i] = 2 * np.pi * cutoff
        else:
            filt[i] = (np.sin(2 * np.pi * cutoff * (i - M // 2)) / (i - M // 2)
                       * (0.42 - 0.5 * np.cos(2 * np.pi * i / M)
                          + 0.08 * np.cos(4 * np.pi * M)))   # matches module source
    return filt / np.sum(filt)


# ----------------------------------------------------------------------------
# Parameter construction.  Besides raw PyTorch-shaped tensors (used by the
# reference), it precomputes the sinc-folded per-phase effective weights and
# packs padded bf16 matmul operands for the fused kernel.
# ----------------------------------------------------------------------------
def init_params(key, n_inputs, n_shortcut, n_outputs, kernel_size, stride):
    S, K, K_s = stride, kernel_size, 15
    assert S > 1
    filt = build_sinc_filter(K_s, 0.5 / S)                       # (15,) float64
    num_pad = (K_s - 1) // 2
    D = num_pad * S + (K_s - 1) // 2                             # centre-crop offset

    # ---- conv weights (PyTorch Conv1d default uniform init) ----
    def uconv(k, c_out, c_in, ks):
        bound = 1.0 / np.sqrt(c_in * ks)
        kw, kb = jax.random.split(k)
        w = jax.random.uniform(kw, (c_out, c_in, ks), jnp.float32, -bound, bound)
        b = jax.random.uniform(kb, (c_out,), jnp.float32, -bound, bound)
        return w, b

    k1, k2 = jax.random.split(key)
    w_pre, b_pre = uconv(k1, n_outputs, n_inputs, kernel_size)
    w_post, b_post = uconv(k2, n_outputs, n_outputs + n_shortcut, kernel_size)

    # ---- fold the fixed transposed sinc conv into w_pre (polyphase fusion) ----
    # up[c, u*S + r] = sum_j x_pad[c, u + q_r - j] * filt[j*S + p_r]
    # y1[o, u*S + r] = lrelu(b_pre[o] + sum_{ci,d} W_eff[r,o,ci,d] * x_pad[ci, u+gmin+d])
    q = [(r + D) // S for r in range(S)]
    p = [(r + D) % S for r in range(S)]
    ntaps = [-(-(K_s - p[r]) // S) for r in range(S)]
    g_all = [(r + k) // S + q[(r + k) % S] - j
             for r in range(S) for k in range(K)
             for j in range(ntaps[(r + k) % S])]
    gmin, gmax = min(g_all), max(g_all)
    K_eff = gmax - gmin + 1
    Dk = (S - 1 + K - 1) // S                                    # max inter-phase column shift

    w_pre64 = np.asarray(w_pre, np.float64)
    w_eff = np.zeros((S, n_outputs, n_inputs, K_eff), np.float64)
    for r in range(S):
        for k in range(K):
            rr, a = (r + k) % S, (r + k) // S
            for j in range(ntaps[rr]):
                d = a + q[rr] - j - gmin
                w_eff[r, :, :, d] += w_pre64[:, :, k] * filt[j * S + p[rr]]

    # ---- packed, channel-padded operands (padded rows/cols are exactly zero,
    #      so padded y1 channels stay 0 after leaky_relu -> concat invariant holds)
    c_in_p = _round_up(n_inputs, 8)
    c_sc_p = _round_up(n_shortcut, 8)
    c_out_p = _round_up(n_outputs, 8)

    w1 = np.zeros((S * c_out_p, K_eff * c_in_p), np.float32)     # all phases row-stacked
    b1 = np.zeros((S * c_out_p, 1), np.float32)
    for r in range(S):
        b1[r * c_out_p:r * c_out_p + n_outputs, 0] = np.asarray(b_pre)
        for d in range(K_eff):
            w1[r * c_out_p:r * c_out_p + n_outputs,
               d * c_in_p:d * c_in_p + n_inputs] = w_eff[r, :, :, d]

    c_cat = c_sc_p + c_out_p
    w2 = np.zeros((c_out_p, K * c_cat), np.float32)              # [w2_sc | w2_pre] fused
    b2 = np.zeros((c_out_p, 1), np.float32)
    b2[:n_outputs, 0] = np.asarray(b_post)
    w_post_np = np.asarray(w_post, np.float64)
    for k in range(K):
        w2[:n_outputs, k * c_cat:k * c_cat + n_shortcut] = w_post_np[:, :n_shortcut, k]
        w2[:n_outputs, k * c_cat + c_sc_p:k * c_cat + c_sc_p + n_outputs] = \
            w_post_np[:, n_shortcut:, k]

    return {
        # raw parameters (numpy reference)
        "sinc": np.tile(filt[None, :], (n_inputs, 1)),
        "w_pre": w_pre, "b_pre": b_pre, "w_post": w_post, "b_post": b_post,
        # packed kernel operands
        "w1": jnp.asarray(w1, MATMUL_DTYPE), "b1": jnp.asarray(b1, jnp.float32),
        "w2": jnp.asarray(w2, MATMUL_DTYPE), "b2": jnp.asarray(b2, jnp.float32),
        # static metadata
        "sinc_k": K_s, "stride": S, "kernel_size": K, "num_pad": num_pad,
        "gmin": gmin, "k_eff": K_eff, "dk": Dk,
        "n_inputs": n_inputs, "n_shortcut": n_shortcut, "n_outputs": n_outputs,
        "c_in_pad": c_in_p, "c_sc_pad": c_sc_p, "c_out_pad": c_out_p,
    }


# ----------------------------------------------------------------------------
# Fused, length-tiled forward pass
# ----------------------------------------------------------------------------
def upsampling_block_forward(params, x, shortcut, tile_cols=512):
    S, K = params["stride"], params["kernel_size"]
    K_eff, Dk, gmin = params["k_eff"], params["dk"], params["gmin"]
    num_pad = params["num_pad"]
    C_in, C_sc, C_out = params["n_inputs"], params["n_shortcut"], params["n_outputs"]
    C_in_p, C_sc_p, C_out_p = params["c_in_pad"], params["c_sc_pad"], params["c_out_pad"]

    N, cx, L = x.shape
    Nb, cs, L_sc = shortcut.shape
    assert cx == C_in and cs == C_sc and Nb == N
    assert tile_cols % 128 == 0 and tile_cols >= 128

    # ---- static geometry --------------------------------------------------
    L_up = (L - 1) * S + 1            # Resample1d(transpose) output length
    L1 = L_up - K + 1                 # after pre-shortcut conv
    L2 = L1 - K + 1                   # after post-shortcut conv (block output)
    assert L1 > 0 and L2 > 0
    diff_sc = L_sc - L1
    assert diff_sc >= 0 and diff_sc % 2 == 0
    crop_sc = diff_sc // 2

    cols_needed = _cdiv(L2, S)                         # per-phase output columns
    TV2 = min(tile_cols, _round_up(cols_needed, 128))  # per-phase cols per tile
    T = _cdiv(cols_needed, TV2)                        # number of length tiles
    V1 = TV2 + Dk                                      # per-phase pre-conv cols per tile
    HALO = 128                                         # halo block width (one lane tile)
    assert Dk + K_eff - 1 <= HALO and Dk <= HALO
    NCOLS = (T + 1) * TV2                              # input columns (>= T*TV2 + HALO)

    # ---- cheap input packing in XLA ---------------------------------------
    # xin[:, :, i] = x_pad[:, :, i + gmin]; zero-extended, channel-padded.
    xp = jnp.pad(x, ((0, 0), (0, 0), (num_pad, num_pad)), mode="reflect")
    if gmin >= 0:
        xp = xp[:, :, gmin:]
    else:
        xp = jnp.pad(xp, ((0, 0), (0, 0), (-gmin, 0)))
    cur = xp.shape[-1]
    xin = jnp.pad(xp, ((0, 0), (0, C_in_p - C_in),
                       (0, max(0, NCOLS - cur))))[:, :, :NCOLS]      # (N, C_in_p, NCOLS)

    # scp[n, p, c, w] = shortcut[n, c, crop_sc + w*S + p] (centre-crop + phase split)
    need_sc = crop_sc + NCOLS * S
    scq = jnp.pad(shortcut, ((0, 0), (0, C_sc_p - C_sc),
                             (0, max(0, need_sc - L_sc))))
    scq = scq[:, :, crop_sc:need_sc]
    scp = scq.reshape(N, C_sc_p, NCOLS, S).transpose(0, 3, 1, 2)     # (N, S, C_sc_p, NCOLS)

    halo_blk = TV2 // 128

    # ---- fused kernel ------------------------------------------------------
    def kernel(x_ref, xh_ref, sc_ref, sch_ref, w1_ref, b1_ref, w2_ref, b2_ref, o_ref):
        # Stage A: (sinc upsample ∘ pre-shortcut conv) -- all S phases in ONE matmul.
        xt = jnp.concatenate([x_ref[...], xh_ref[...]], axis=1)       # (C_in_p, TV2+128)
        slab1 = jnp.concatenate([xt[:, d:d + V1] for d in range(K_eff)], axis=0)
        y1 = jnp.dot(w1_ref[...], slab1.astype(MATMUL_DTYPE),
                     preferred_element_type=jnp.float32) + b1_ref[...]
        y1 = jnp.maximum(y1, 0.01 * y1)                               # (S*C_out_p, V1) f32

        # Stage B: post-shortcut conv; channel-concat fused via [w2_sc|w2_pre]
        # and the S output phases batched along the column axis -> ONE matmul.
        sct = jnp.concatenate([sc_ref[...], sch_ref[...]], axis=2)    # (S, C_sc_p, TV2+128)

        # dedup the (phase, shift) views: t = s + k takes only S+K-1 distinct values
        sc_v, y1_v = [], []
        for t in range(S + K - 1):
            ph, sh = t % S, t // S
            sc_v.append(sct[ph, :, sh:sh + TV2])                      # (C_sc_p, TV2)
            y1_v.append(y1[ph * C_out_p:(ph + 1) * C_out_p, sh:sh + TV2])

        col_blocks = []
        for s in range(S):
            rows = []
            for k in range(K):
                rows.append(sc_v[s + k])
                rows.append(y1_v[s + k])
            col_blocks.append(jnp.concatenate(rows, axis=0))          # (K*(Csc+Cout), TV2)
        slab2 = jnp.concatenate(col_blocks, axis=1)                   # (K*(Csc+Cout), S*TV2)

        out = jnp.dot(w2_ref[...], slab2.astype(MATMUL_DTYPE),
                      preferred_element_type=jnp.float32) + b2_ref[...]
        out = jnp.maximum(out, 0.01 * out)                            # (C_out_p, S*TV2)
        for s in range(S):                                            # lane-dense stores
            o_ref[s] = out[:, s * TV2:(s + 1) * TV2].astype(o_ref.dtype)

    out = pl.pallas_call(
        kernel,
        out_shape=jax.ShapeDtypeStruct((N, S, C_out_p, T * TV2), jnp.float32),
        grid=(N, T),
        in_specs=[
            # main tile + 128-wide halo tile of the same array (overlap window)
            pl.BlockSpec((None, C_in_p, TV2), lambda n, j: (n, 0, j)),
            pl.BlockSpec((None, C_in_p, HALO), lambda n, j: (n, 0, (j + 1) * halo_blk)),
            pl.BlockSpec((None, S, C_sc_p, TV2), lambda n, j: (n, 0, 0, j)),
            pl.BlockSpec((None, S, C_sc_p, HALO), lambda n, j: (n, 0, 0, (j + 1) * halo_blk)),
            pl.BlockSpec((S * C_out_p, K_eff * C_in_p), lambda n, j: (0, 0)),
            pl.BlockSpec((S * C_out_p, 1), lambda n, j: (0, 0)),
            pl.BlockSpec((C_out_p, K * (C_sc_p + C_out_p)), lambda n, j: (0, 0)),
            pl.BlockSpec((C_out_p, 1), lambda n, j: (0, 0)),
        ],
        out_specs=pl.BlockSpec((None, S, C_out_p, TV2), lambda n, j: (n, 0, 0, j)),
        compiler_params=pltpu.CompilerParams(
            dimension_semantics=("parallel", "parallel"),
            # Working set at tile_cols=512 and these channel counts is << 1 MiB;
            # 64 MiB leaves headroom for production channel widths while staying
            # within v7x's physical VMEM (lower tile_cols there for wide layers).
            vmem_limit_bytes=64 * 1024 * 1024),
    )(xin, xin, scp, scp, params["w1"], params["b1"], params["w2"], params["b2"])

    # Phase de-interleave + crops (XLA glue for the standalone test; a full
    # network would consume the phase-major (N, S, C, V) layout directly).
    out = out[:, :, :C_out, :]                                  # (N, S, C_out, T*TV2)
    out = out.transpose(0, 2, 3, 1).reshape(N, C_out, T * TV2 * S)   # t = v*S + s
    return out[:, :, :L2]


# ----------------------------------------------------------------------------
# Pure-numpy reference (float64) -- faithful to the PyTorch module semantics.
# ----------------------------------------------------------------------------
def _np_conv1d_lrelu(x, w, b, slope=0.01):
    Co, Ci, K = w.shape
    Lo = x.shape[-1] - K + 1
    xw = np.stack([x[:, :, k:k + Lo] for k in range(K)], axis=-1)  # N,Ci,Lo,K
    out = np.einsum("oik,nitk->not", w, xw) + b[None, :, None]
    return np.where(out >= 0, out, slope * out)


def _np_dw_corr(x, f):
    K = f.shape[-1]
    Lo = x.shape[-1] - K + 1
    xw = np.stack([x[:, :, k:k + Lo] for k in range(K)], axis=-1)  # N,C,Lo,K
    return np.einsum("ck,nctk->nct", f, xw)


def ref_forward(params, x, shortcut):
    x = np.asarray(x, np.float64)
    shortcut = np.asarray(shortcut, np.float64)
    f = np.asarray(params["sinc"], np.float64)
    K_s, S = params["sinc_k"], params["stride"]
    num_pad = (K_s - 1) // 2
    xp = np.pad(x, ((0, 0), (0, 0), (num_pad, num_pad)), mode="reflect")
    Lp = xp.shape[-1]
    xu = np.zeros((x.shape[0], x.shape[1], (Lp - 1) * S + 1))
    xu[:, :, ::S] = xp
    xu = np.pad(xu, ((0, 0), (0, 0), (K_s - 1, K_s - 1)))
    up = _np_dw_corr(xu, f[:, ::-1])
    expected = (x.shape[-1] - 1) * S + 1
    d = (up.shape[-1] - expected) // 2
    up = up[:, :, d:up.shape[-1] - d]
    up = _np_conv1d_lrelu(up, np.asarray(params["w_pre"], np.float64),
                          np.asarray(params["b_pre"], np.float64))
    c = (shortcut.shape[-1] - up.shape[-1]) // 2
    comb = shortcut[:, :, c:shortcut.shape[-1] - c]
    cat = np.concatenate([comb, up], axis=1)
    return _np_conv1d_lrelu(cat, np.asarray(params["w_post"], np.float64),
                            np.asarray(params["b_post"], np.float64))


# ----------------------------------------------------------------------------
if __name__ == "__main__":
    n_inputs, n_shortcut, n_outputs = 4, 4, 4
    kernel_size, stride = 5, 2

    key = jax.random.PRNGKey(0)
    kx, ks, kp, kx2, ks2 = jax.random.split(key, 5)
    params = init_params(kp, n_inputs, n_shortcut, n_outputs, kernel_size, stride)

    # bf16 MXU operands (f32 accumulation) -> tolerances sized for bf16 rounding.
    RTOL = ATOL = 2e-2

    # Case 1: small shapes (single length tile).
    N, L, L_short = 2, 16, 31
    x = jax.random.normal(kx, (N, n_inputs, L), jnp.float32)
    shortcut = jax.random.normal(ks, (N, n_shortcut, L_short), jnp.float32)
    out = jax.block_until_ready(upsampling_block_forward(params, x, shortcut))
    ref = ref_forward(params, x, shortcut)
    assert out.shape == ref.shape, (out.shape, ref.shape)
    np.testing.assert_allclose(np.asarray(out), ref, rtol=RTOL, atol=ATOL)

    # Case 2: longer clip with a small tile -> 2 length tiles (exercises the
    # halo'd tiling path and the parallel (batch, tile) grid).
    N2, Lb, Lb_short = 1, 200, 401
    x2 = jax.random.normal(kx2, (N2, n_inputs, Lb), jnp.float32)
    sc2 = jax.random.normal(ks2, (N2, n_shortcut, Lb_short), jnp.float32)
    out2 = jax.block_until_ready(
        upsampling_block_forward(params, x2, sc2, tile_cols=128))
    ref2 = ref_forward(params, x2, sc2)
    assert out2.shape == ref2.shape, (out2.shape, ref2.shape)
    np.testing.assert_allclose(np.asarray(out2), ref2, rtol=RTOL, atol=ATOL)

    print("KERNEL_OK")
</pallas_src>

<mosaic_0001>
module attributes {stable_mosaic.version = 11 : i64} {
  func.func @kernel(%arg0: i32, %arg1: i32, %arg2: memref<1x8x128xf32, #tpu.memory_space<vmem>>, %arg3: memref<1x8x128xf32, #tpu.memory_space<vmem>>, %arg4: memref<1x2x8x128xf32, #tpu.memory_space<vmem>>, %arg5: memref<1x2x8x128xf32, #tpu.memory_space<vmem>>, %arg6: memref<16x80xbf16, #tpu.memory_space<vmem>>, %arg7: memref<16x1xf32, #tpu.memory_space<vmem>>, %arg8: memref<8x80xbf16, #tpu.memory_space<vmem>>, %arg9: memref<8x1xf32, #tpu.memory_space<vmem>>, %arg10: memref<1x2x8x128xf32, #tpu.memory_space<vmem>>) attributes {dimension_semantics = [#tpu.dimension_semantics<parallel>, #tpu.dimension_semantics<parallel>], iteration_bounds = array<i64: 2, 1>, scalar_prefetch = 0 : i64, scratch_operands = 0 : i64, tpu.core_type = #tpu.core_type<tc>, window_params = [{transform_indices = @transform_0, window_bounds = array<i64: 1, 8, 128>}, {transform_indices = @transform_1, window_bounds = array<i64: 1, 8, 128>}, {transform_indices = @transform_2, window_bounds = array<i64: 1, 2, 8, 128>}, {transform_indices = @transform_3, window_bounds = array<i64: 1, 2, 8, 128>}, {pipeline_mode = #tpu.pipeline_mode<synchronous>, transform_indices = @transform_4, window_bounds = array<i64: 16, 80>}, {pipeline_mode = #tpu.pipeline_mode<synchronous>, transform_indices = @transform_5, window_bounds = array<i64: 16, 1>}, {pipeline_mode = #tpu.pipeline_mode<synchronous>, transform_indices = @transform_6, window_bounds = array<i64: 8, 80>}, {pipeline_mode = #tpu.pipeline_mode<synchronous>, transform_indices = @transform_7, window_bounds = array<i64: 8, 1>}, {transform_indices = @transform_8, window_bounds = array<i64: 1, 2, 8, 128>}]} {
    %c0 = arith.constant 0 : index
    %c0_0 = arith.constant 0 : index
    %c0_1 = arith.constant 0 : index
    %0 = vector.load %arg2[%c0, %c0_0, %c0_1] : memref<1x8x128xf32, #tpu.memory_space<vmem>>, vector<1x8x128xf32>
    %1 = vector.shape_cast %0 : vector<1x8x128xf32> to vector<8x128xf32>
    %c0_2 = arith.constant 0 : index
    %c0_3 = arith.constant 0 : index
    %c0_4 = arith.constant 0 : index
    %2 = vector.load %arg3[%c0_2, %c0_3, %c0_4] : memref<1x8x128xf32, #tpu.memory_space<vmem>>, vector<1x8x128xf32>
    %3 = vector.shape_cast %2 : vector<1x8x128xf32> to vector<8x128xf32>
    %4 = tpu.concatenate %1, %3 in 1 : vector<8x128xf32>, vector<8x128xf32> -> vector<8x256xf32>
    %5 = vector.extract_strided_slice %4 {offsets = [0, 0], sizes = [8, 130], strides = [1, 1]} : vector<8x256xf32> to vector<8x130xf32>
    %6 = vector.extract_strided_slice %4 {offsets = [0, 1], sizes = [8, 130], strides = [1, 1]} : vector<8x256xf32> to vector<8x130xf32>
    %7 = vector.extract_strided_slice %4 {offsets = [0, 2], sizes = [8, 130], strides = [1, 1]} : vector<8x256xf32> to vector<8x130xf32>
    %8 = vector.extract_strided_slice %4 {offsets = [0, 3], sizes = [8, 130], strides = [1, 1]} : vector<8x256xf32> to vector<8x130xf32>
    %9 = vector.extract_strided_slice %4 {offsets = [0, 4], sizes = [8, 130], strides = [1, 1]} : vector<8x256xf32> to vector<8x130xf32>
    %10 = vector.extract_strided_slice %4 {offsets = [0, 5], sizes = [8, 130], strides = [1, 1]} : vector<8x256xf32> to vector<8x130xf32>
    %11 = vector.extract_strided_slice %4 {offsets = [0, 6], sizes = [8, 130], strides = [1, 1]} : vector<8x256xf32> to vector<8x130xf32>
    %12 = vector.extract_strided_slice %4 {offsets = [0, 7], sizes = [8, 130], strides = [1, 1]} : vector<8x256xf32> to vector<8x130xf32>
    %13 = vector.extract_strided_slice %4 {offsets = [0, 8], sizes = [8, 130], strides = [1, 1]} : vector<8x256xf32> to vector<8x130xf32>
    %14 = vector.extract_strided_slice %4 {offsets = [0, 9], sizes = [8, 130], strides = [1, 1]} : vector<8x256xf32> to vector<8x130xf32>
    %15 = tpu.concatenate %5, %6, %7, %8, %9, %10, %11, %12, %13, %14 in 0 : vector<8x130xf32>, vector<8x130xf32>, vector<8x130xf32>, vector<8x130xf32>, vector<8x130xf32>, vector<8x130xf32>, vector<8x130xf32>, vector<8x130xf32>, vector<8x130xf32>, vector<8x130xf32> -> vector<80x130xf32>
    %c0_5 = arith.constant 0 : index
    %c0_6 = arith.constant 0 : index
    %16 = vector.load %arg6[%c0_5, %c0_6] : memref<16x80xbf16, #tpu.memory_space<vmem>>, vector<16x80xbf16>
    %17 = arith.truncf %15 : vector<80x130xf32> to vector<80x130xbf16>
    %cst = arith.constant dense<0.000000e+00> : vector<16x130xf32>
    %18 = tpu.matmul %16, %17, %cst {dimension_numbers = #tpu.dot_dimension_numbers<[1], [0], [0], [1], [0, 0, 1, 1], [], []>} : vector<16x80xbf16>, vector<80x130xbf16>, vector<16x130xf32> -> vector<16x130xf32>
    %c0_7 = arith.constant 0 : index
    %c0_8 = arith.constant 0 : index
    %19 = vector.load %arg7[%c0_7, %c0_8] : memref<16x1xf32, #tpu.memory_space<vmem>>, vector<16x1xf32>
    %20 = vector.broadcast %19 : vector<16x1xf32> to vector<16x130xf32>
    %21 = arith.addf %18, %20 : vector<16x130xf32>
    %cst_9 = arith.constant 0.00999999977 : f32
    %22 = vector.broadcast %cst_9 : f32 to vector<16x130xf32>
    %23 = arith.mulf %22, %21 : vector<16x130xf32>
    %24 = arith.maximumf %21, %23 : vector<16x130xf32>
    %c0_10 = arith.constant 0 : index
    %c0_11 = arith.constant 0 : index
    %c0_12 = arith.constant 0 : index
    %c0_13 = arith.constant 0 : index
    %25 = vector.load %arg4[%c0_10, %c0_11, %c0_12, %c0_13] : memref<1x2x8x128xf32, #tpu.memory_space<vmem>>, vector<1x2x8x128xf32>
    %26 = vector.shape_cast %25 : vector<1x2x8x128xf32> to vector<2x8x128xf32>
    %c0_14 = arith.constant 0 : index
    %c0_15 = arith.constant 0 : index
    %c0_16 = arith.constant 0 : index
    %c0_17 = arith.constant 0 : index
    %27 = vector.load %arg5[%c0_14, %c0_15, %c0_16, %c0_17] : memref<1x2x8x128xf32, #tpu.memory_space<vmem>>, vector<1x2x8x128xf32>
    %28 = vector.shape_cast %27 : vector<1x2x8x128xf32> to vector<2x8x128xf32>
    %29 = tpu.concatenate %26, %28 in 2 : vector<2x8x128xf32>, vector<2x8x128xf32> -> vector<2x8x256xf32>
    %30 = vector.extract_strided_slice %29 {offsets = [0, 0, 0], sizes = [1, 8, 128], strides = [1, 1, 1]} : vector<2x8x256xf32> to vector<1x8x128xf32>
    %31 = vector.shape_cast %30 : vector<1x8x128xf32> to vector<8x128xf32>
    %32 = vector.extract_strided_slice %24 {offsets = [0, 0], sizes = [8, 128], strides = [1, 1]} : vector<16x130xf32> to vector<8x128xf32>
    %33 = vector.extract_strided_slice %29 {offsets = [1, 0, 0], sizes = [1, 8, 128], strides = [1, 1, 1]} : vector<2x8x256xf32> to vector<1x8x128xf32>
    %34 = vector.shape_cast %33 : vector<1x8x128xf32> to vector<8x128xf32>
    %35 = vector.extract_strided_slice %24 {offsets = [8, 0], sizes = [8, 128], strides = [1, 1]} : vector<16x130xf32> to vector<8x128xf32>
    %36 = vector.extract_strided_slice %29 {offsets = [0, 0, 1], sizes = [1, 8, 128], strides = [1, 1, 1]} : vector<2x8x256xf32> to vector<1x8x128xf32>
    %37 = vector.shape_cast %36 : vector<1x8x128xf32> to vector<8x128xf32>
    %38 = vector.extract_strided_slice %24 {offsets = [0, 1], sizes = [8, 128], strides = [1, 1]} : vector<16x130xf32> to vector<8x128xf32>
    %39 = vector.extract_strided_slice %29 {offsets = [1, 0, 1], sizes = [1, 8, 128], strides = [1, 1, 1]} : vector<2x8x256xf32> to vector<1x8x128xf32>
    %40 = vector.shape_cast %39 : vector<1x8x128xf32> to vector<8x128xf32>
    %41 = vector.extract_strided_slice %24 {offsets = [8, 1], sizes = [8, 128], strides = [1, 1]} : vector<16x130xf32> to vector<8x128xf32>
    %42 = vector.extract_strided_slice %29 {offsets = [0, 0, 2], sizes = [1, 8, 128], strides = [1, 1, 1]} : vector<2x8x256xf32> to vector<1x8x128xf32>
    %43 = vector.shape_cast %42 : vector<1x8x128xf32> to vector<8x128xf32>
    %44 = vector.extract_strided_slice %24 {offsets = [0, 2], sizes = [8, 128], strides = [1, 1]} : vector<16x130xf32> to vector<8x128xf32>
    %45 = vector.extract_strided_slice %29 {offsets = [1, 0, 2], sizes = [1, 8, 128], strides = [1, 1, 1]} : vector<2x8x256xf32> to vector<1x8x128xf32>
    %46 = vector.shape_cast %45 : vector<1x8x128xf32> to vector<8x128xf32>
    %47 = vector.extract_strided_slice %24 {offsets = [8, 2], sizes = [8, 128], strides = [1, 1]} : vector<16x130xf32> to vector<8x128xf32>
    %48 = tpu.concatenate %31, %32, %34, %35, %37, %38, %40, %41, %43, %44 in 0 : vector<8x128xf32>, vector<8x128xf32>, vector<8x128xf32>, vector<8x128xf32>, vector<8x128xf32>, vector<8x128xf32>, vector<8x128xf32>, vector<8x128xf32>, vector<8x128xf32>, vector<8x128xf32> -> vector<80x128xf32>
    %49 = tpu.concatenate %34, %35, %37, %38, %40, %41, %43, %44, %46, %47 in 0 : vector<8x128xf32>, vector<8x128xf32>, vector<8x128xf32>, vector<8x128xf32>, vector<8x128xf32>, vector<8x128xf32>, vector<8x128xf32>, vector<8x128xf32>, vector<8x128xf32>, vector<8x128xf32> -> vector<80x128xf32>
    %50 = tpu.concatenate %48, %49 in 1 : vector<80x128xf32>, vector<80x128xf32> -> vector<80x256xf32>
    %c0_18 = arith.constant 0 : index
    %c0_19 = arith.constant 0 : index
    %51 = vector.load %arg8[%c0_18, %c0_19] : memref<8x80xbf16, #tpu.memory_space<vmem>>, vector<8x80xbf16>
    %52 = arith.truncf %50 : vector<80x256xf32> to vector<80x256xbf16>
    %cst_20 = arith.constant dense<0.000000e+00> : vector<8x256xf32>
    %53 = tpu.matmul %51, %52, %cst_20 {dimension_numbers = #tpu.dot_dimension_numbers<[1], [0], [0], [1], [0, 0, 1, 1], [], []>} : vector<8x80xbf16>, vector<80x256xbf16>, vector<8x256xf32> -> vector<8x256xf32>
    %c0_21 = arith.constant 0 : index
    %c0_22 = arith.constant 0 : index
    %54 = vector.load %arg9[%c0_21, %c0_22] : memref<8x1xf32, #tpu.memory_space<vmem>>, vector<8x1xf32>
    %55 = vector.broadcast %54 : vector<8x1xf32> to vector<8x256xf32>
    %56 = arith.addf %53, %55 : vector<8x256xf32>
    %cst_23 = arith.constant 0.00999999977 : f32
    %57 = vector.broadcast %cst_23 : f32 to vector<8x256xf32>
    %58 = arith.mulf %57, %56 : vector<8x256xf32>
    %59 = arith.maximumf %56, %58 : vector<8x256xf32>
    %60 = vector.extract_strided_slice %59 {offsets = [0, 0], sizes = [8, 128], strides = [1, 1]} : vector<8x256xf32> to vector<8x128xf32>
    %c0_24 = arith.constant 0 : index
    %c0_25 = arith.constant 0 : index
    %c0_26 = arith.constant 0 : index
    %c0_27 = arith.constant 0 : index
    %61 = vector.load %arg10[%c0_24, %c0_25, %c0_26, %c0_27] : memref<1x2x8x128xf32, #tpu.memory_space<vmem>>, vector<1x1x8x128xf32>
    %62 = vector.shape_cast %61 : vector<1x1x8x128xf32> to vector<8x128xf32>
    %63 = vector.shape_cast %60 : vector<8x128xf32> to vector<1x1x8x128xf32>
    tpu.vector_store %arg10[%c0_24, %c0_25, %c0_26, %c0_27], %63 {strides = array<i32>} : memref<1x2x8x128xf32, #tpu.memory_space<vmem>>, vector<1x1x8x128xf32>,
    %64 = vector.extract_strided_slice %59 {offsets = [0, 128], sizes = [8, 128], strides = [1, 1]} : vector<8x256xf32> to vector<8x128xf32>
    %c0_28 = arith.constant 0 : index
    %c1 = arith.constant 1 : index
    %c0_29 = arith.constant 0 : index
    %c0_30 = arith.constant 0 : index
    %65 = vector.load %arg10[%c0_28, %c1, %c0_29, %c0_30] : memref<1x2x8x128xf32, #tpu.memory_space<vmem>>, vector<1x1x8x128xf32>
    %66 = vector.shape_cast %65 : vector<1x1x8x128xf32> to vector<8x128xf32>
    %67 = vector.shape_cast %64 : vector<8x128xf32> to vector<1x1x8x128xf32>
    tpu.vector_store %arg10[%c0_28, %c1, %c0_29, %c0_30], %67 {strides = array<i32>} : memref<1x2x8x128xf32, #tpu.memory_space<vmem>>, vector<1x1x8x128xf32>,
    return
  }
  func.func @transform_0(%arg0: i32, %arg1: i32) -> (i32, i32, i32) {
    %c0_i32 = arith.constant 0 : i32
    %c0_i32_0 = arith.constant 0 : i32
    return %arg0, %c0_i32, %arg1 : i32, i32, i32
  }
  func.func @transform_1(%arg0: i32, %arg1: i32) -> (i32, i32, i32) {
    %c1_i32 = arith.constant 1 : i32
    %0 = arith.addi %arg1, %c1_i32 : i32
    %c1_i32_0 = arith.constant 1 : i32
    %1 = arith.muli %0, %c1_i32_0 : i32
    %c0_i32 = arith.constant 0 : i32
    %c0_i32_1 = arith.constant 0 : i32
    return %arg0, %c0_i32, %1 : i32, i32, i32
  }
  func.func @transform_2(%arg0: i32, %arg1: i32) -> (i32, i32, i32, i32) {
    %c0_i32 = arith.constant 0 : i32
    %c0_i32_0 = arith.constant 0 : i32
    %c0_i32_1 = arith.constant 0 : i32
    return %arg0, %c0_i32, %c0_i32_0, %arg1 : i32, i32, i32, i32
  }
  func.func @transform_3(%arg0: i32, %arg1: i32) -> (i32, i32, i32, i32) {
    %c1_i32 = arith.constant 1 : i32
    %0 = arith.addi %arg1, %c1_i32 : i32
    %c1_i32_0 = arith.constant 1 : i32
    %1 = arith.muli %0, %c1_i32_0 : i32
    %c0_i32 = arith.constant 0 : i32
    %c0_i32_1 = arith.constant 0 : i32
    %c0_i32_2 = arith.constant 0 : i32
    return %arg0, %c0_i32, %c0_i32_1, %1 : i32, i32, i32, i32
  }
  func.func @transform_4(%arg0: i32, %arg1: i32) -> (i32, i32) {
    %c0_i32 = arith.constant 0 : i32
    %c0_i32_0 = arith.constant 0 : i32
    %c0_i32_1 = arith.constant 0 : i32
    return %c0_i32, %c0_i32_0 : i32, i32
  }
  func.func @transform_5(%arg0: i32, %arg1: i32) -> (i32, i32) {
    %c0_i32 = arith.constant 0 : i32
    %c0_i32_0 = arith.constant 0 : i32
    %c0_i32_1 = arith.constant 0 : i32
    return %c0_i32, %c0_i32_0 : i32, i32
  }
  func.func @transform_6(%arg0: i32, %arg1: i32) -> (i32, i32) {
    %c0_i32 = arith.constant 0 : i32
    %c0_i32_0 = arith.constant 0 : i32
    %c0_i32_1 = arith.constant 0 : i32
    return %c0_i32, %c0_i32_0 : i32, i32
  }
  func.func @transform_7(%arg0: i32, %arg1: i32) -> (i32, i32) {
    %c0_i32 = arith.constant 0 : i32
    %c0_i32_0 = arith.constant 0 : i32
    %c0_i32_1 = arith.constant 0 : i32
    return %c0_i32, %c0_i32_0 : i32, i32
  }
  func.func @transform_8(%arg0: i32, %arg1: i32) -> (i32, i32, i32, i32) {
    %c0_i32 = arith.constant 0 : i32
    %c0_i32_0 = arith.constant 0 : i32
    %c0_i32_1 = arith.constant 0 : i32
    return %arg0, %c0_i32, %c0_i32_0, %arg1 : i32, i32, i32, i32
  }
}

</mosaic_0001>

<llo_original>
// kernel: tpu_custom_call.1
$region0: #{tpu_custom_call.1}
  #allocation0 [shape = 'u32[]', space=smem, size = 0x4, offset = 0x4, fixed_abs, tag = 'smem constant byte address 0x4 - core index']
  #allocation1 [shape = 'u32[72,128]{1,0:T(1,128)}', space=vmem, size = 0x9000, scoped, tag = 'internal scratch']
  %s0 = inlined_call_operand.hbm [shape: f32[2,8,256], index: 0, kind: input, shape index: {}]
  %s1 = inlined_call_operand.hbm [shape: f32[2,8,256], index: 1, kind: input, shape index: {}]
  %s2 = inlined_call_operand.hbm [shape: f32[2,2,8,256], index: 2, kind: input, shape index: {}]
  %s3 = inlined_call_operand.hbm [shape: f32[2,2,8,256], index: 3, kind: input, shape index: {}]
  %s4 = inlined_call_operand.vmem [shape: bf16[16,80], index: 4, kind: input, shape index: {}]
  %s5 = inlined_call_operand.vmem [shape: f32[16,1], index: 5, kind: input, shape index: {}]
  %s6 = inlined_call_operand.vmem [shape: bf16[8,80], index: 6, kind: input, shape index: {}]
  %s7 = inlined_call_operand.vmem [shape: f32[8,1], index: 7, kind: input, shape index: {}]
  %s8 = inlined_call_operand.hbm [shape: f32[2,2,8,128], index: 8, kind: output, shape index: {}]
  %s9 = sld [smem:[#allocation0]]
  $region81: #{tpu_custom_call.1} parent=0
    _
  %s11 = ssub.s32 1, %s9
  %s12 = scalar_select 0, %s11, %s9
  $region1: #{tpu_custom_call.1} parent=0
    #allocation2 [shape = 'u8[8192]{0}', space=vmem, size = 0x2000, scoped, tag = 'input window, operand 0']
    #allocation3 [shape = 's32[2]{0}', space=sflag, size = 0x8, scoped, tag = 'scoped memory for tpu_custom_call.1']
    #allocation4 [shape = 's32[2]{0}', space=sflag, size = 0x8, scoped, tag = 'scoped memory for tpu_custom_call.1']
    #allocation5 [shape = 'u8[8192]{0}', space=vmem, size = 0x2000, scoped, tag = 'input window, operand 1']
    #allocation6 [shape = 's32[2]{0}', space=sflag, size = 0x8, scoped, tag = 'scoped memory for tpu_custom_call.1']
    #allocation7 [shape = 'u8[16384]{0}', space=vmem, size = 0x4000, scoped, tag = 'input window, operand 2']
    #allocation8 [shape = 'u8[16384]{0}', space=vmem, size = 0x4000, scoped, tag = 'input window, operand 3']
    #allocation9 [shape = 's32[2]{0}', space=sflag, size = 0x8, scoped, tag = 'scoped memory for tpu_custom_call.1']
    #allocation10 [shape = 'u8[16384]{0}', space=vmem, size = 0x4000, scoped, tag = 'output window, operand 0']
    %13 = vsyncpa [#allocation3], 0
    %s14 = scalar_lea.sflag [#allocation3], 1
    %15 = vsyncpa %s14, 0
    %16 = vsyncpa [#allocation6], 0
    %s17 = scalar_lea.sflag [#allocation6], 1
    %18 = vsyncpa %s17, 0
    %19 = vsyncpa [#allocation9], 0
    %s20 = scalar_lea.sflag [#allocation9], 1
    %21 = vsyncpa %s20, 0
    %22 = vsyncpa [#allocation4], 0
    %s23 = scalar_lea.sflag [#allocation4], 1
    %24 = vsyncpa %s23, 0
    loop: start=0, step=1, limit=4
    $region2: #{tpu_custom_call.1} parent=1 // loop_pre_header
      _
    $region3: #{tpu_custom_call.1} parent=1 // loop_header
      %s26 = sphi 0, %s30
      %p27 = scmp.ge.s32.totalorder %s26, 4
      %s33 = sphi 0, %s45
      %s34 = sphi 0, %s41
      %s35 = sphi 0, %s33
      %s36 = sphi 0, %s34
      %s37 = sphi 0, %s35
      %s38 = sphi 0, %s36
      %s50 = sphi 0, %s52
      %s53 = sphi 0, %s50
      %s54 = sphi 0, %s53
      %s70 = sphi 0, %s54
      %s80 = sphi 0, %s82
      %s83 = sphi 0, %s80
      %s84 = sphi 0, %s83
      %s100 = sphi 0, %s84
      %s108 = sphi 0, %s110
      %s111 = sphi 0, %s108
      %s112 = sphi 0, %s111
      %s128 = sphi 0, %s112
      %s138 = sphi 0, %s140
      %s141 = sphi 0, %s138
      %s142 = sphi 0, %s141
      %s158 = sphi 0, %s142
      %s162 = sphi 0, %s162
      %s164 = sphi 0, %s162
      %s165 = sphi 0, %s164
      %s179 = sphi 0, %s165
      %s183 = sphi 0, %s183
      %s185 = sphi 0, %s183
      %s186 = sphi 0, %s185
      %s200 = sphi 0, %s186
      %s204 = sphi 0, %s204
      %s206 = sphi 0, %s204
      %s207 = sphi 0, %s206
      %s221 = sphi 0, %s207
      %s225 = sphi 0, %s225
      %s227 = sphi 0, %s225
      %s228 = sphi 0, %s227
      %s242 = sphi 0, %s228
      %s250 = sphi 0, %s252
      %s253 = sphi 0, %s250
      %s254 = sphi 0, %s253
      %s270 = sphi 0, %s254
    $region4: #{tpu_custom_call.1} parent=1 // loop_header_branch
      %29 = sbr.rel (%p27) target = $region8
    $region5: #{tpu_custom_call.1} parent=1 // loop_body
      %s31 = ssub.s32 %s26, 1
      %s32 = ssub.s32 %s26, 2
      %s39 = sadd.s32 1, %s34
      %p40 = scmp.ge.s32.totalorder %s39, 1
      %s41 = scalar_select %p40, 0, %s39
      %s42 = sadd.s32 1, %s33
      %s43 = scalar_select %p40, %s42, %s33
      %p44 = scmp.ge.s32.totalorder %s43, 2
      %s45 = scalar_select %p44, 0, %s43
      %s46 = ssub.s32 %s33, %s45
      %s47 = ssub.s32 %s34, %s41
      %s48 = sor.u32 %s46, %s47
      %p49 = scmp.eq.s32.totalorder %s48, 0
      %s51 = sadd.s32 %s50, 1
      %s52 = scalar_select %p49, %s50, %s51
      %p55 = pneg %p49
      %p56 = scmp.eq.s32.totalorder %s26, 1
      %p57 = por %p55, %p56
      %p58 = scmp.ne.s32.totalorder %s50, %s53
      %p59 = scmp.eq.s32.totalorder %s26, 0
      %p60 = por %p58, %p59
      %p61 = scmp.ne.s32.totalorder %s50, %s53
      %p62 = scmp.eq.s32.totalorder %s31, 1
      %p63 = por %p61, %p62
      %p64 = scmp.ne.s32.totalorder %s53, %s54
      %p65 = scmp.eq.s32.totalorder %s31, 0
      %p66 = por %p64, %p65
      %p67 = scmp.ne.s32.totalorder %s53, %s54
      %p68 = scmp.eq.s32.totalorder %s32, 1
      %p69 = por %p67, %p68
      %p71 = scmp.ne.s32.totalorder %s54, %s70
      %p72 = scmp.eq.s32.totalorder %s32, 0
      %p73 = por %p71, %p72
      %s74 = sadd.s32 %s34, 1
      %s75 = sadd.s32 %s41, 1
      %s76 = ssub.s32 %s33, %s45
      %s77 = ssub.s32 %s74, %s75
      %s78 = sor.u32 %s76, %s77
      %p79 = scmp.eq.s32.totalorder %s78, 0
      %s81 = sadd.s32 %s80, 1
      %s82 = scalar_select %p79, %s80, %s81
      %p85 = pneg %p79
      %p86 = scmp.eq.s32.totalorder %s26, 1
      %p87 = por %p85, %p86
      %p88 = scmp.ne.s32.totalorder %s80, %s83
      %p89 = scmp.eq.s32.totalorder %s26, 0
      %p90 = por %p88, %p89
      %p91 = scmp.ne.s32.totalorder %s80, %s83
      %p92 = scmp.eq.s32.totalorder %s31, 1
      %p93 = por %p91, %p92
      %p94 = scmp.ne.s32.totalorder %s83, %s84
      %p95 = scmp.eq.s32.totalorder %s31, 0
      %p96 = por %p94, %p95
      %p97 = scmp.ne.s32.totalorder %s83, %s84
      %p98 = scmp.eq.s32.totalorder %s32, 1
      %p99 = por %p97, %p98
      %p101 = scmp.ne.s32.totalorder %s84, %s100
      %p102 = scmp.eq.s32.totalorder %s32, 0
      %p103 = por %p101, %p102
      %s104 = ssub.s32 %s33, %s45
      %s105 = ssub.s32 %s34, %s41
      %s106 = sor.u32 %s104, %s105
      %p107 = scmp.eq.s32.totalorder %s106, 0
      %s109 = sadd.s32 %s108, 1
      %s110 = scalar_select %p107, %s108, %s109
      %p113 = pneg %p107
      %p114 = scmp.eq.s32.totalorder %s26, 1
      %p115 = por %p113, %p114
      %p116 = scmp.ne.s32.totalorder %s108, %s111
      %p117 = scmp.eq.s32.totalorder %s26, 0
      %p118 = por %p116, %p117
      %p119 = scmp.ne.s32.totalorder %s108, %s111
      %p120 = scmp.eq.s32.totalorder %s31, 1
      %p121 = por %p119, %p120
      %p122 = scmp.ne.s32.totalorder %s111, %s112
      %p123 = scmp.eq.s32.totalorder %s31, 0
      %p124 = por %p122, %p123
      %p125 = scmp.ne.s32.totalorder %s111, %s112
      %p126 = scmp.eq.s32.totalorder %s32, 1
      %p127 = por %p125, %p126
      %p129 = scmp.ne.s32.totalorder %s112, %s128
      %p130 = scmp.eq.s32.totalorder %s32, 0
      %p131 = por %p129, %p130
      %s132 = sadd.s32 %s34, 1
      %s133 = sadd.s32 %s41, 1
      %s134 = ssub.s32 %s33, %s45
      %s135 = ssub.s32 %s132, %s133
      %s136 = sor.u32 %s134, %s135
      %p137 = scmp.eq.s32.totalorder %s136, 0
      %s139 = sadd.s32 %s138, 1
      %s140 = scalar_select %p137, %s138, %s139
      %p143 = pneg %p137
      %p144 = scmp.eq.s32.totalorder %s26, 1
      %p145 = por %p143, %p144
      %p146 = scmp.ne.s32.totalorder %s138, %s141
      %p147 = scmp.eq.s32.totalorder %s26, 0
      %p148 = por %p146, %p147
      %p149 = scmp.ne.s32.totalorder %s138, %s141
      %p150 = scmp.eq.s32.totalorder %s31, 1
      %p151 = por %p149, %p150
      %p152 = scmp.ne.s32.totalorder %s141, %s142
      %p153 = scmp.eq.s32.totalorder %s31, 0
      %p154 = por %p152, %p153
      %p155 = scmp.ne.s32.totalorder %s141, %s142
      %p156 = scmp.eq.s32.totalorder %s32, 1
      %p157 = por %p155, %p156
      %p159 = scmp.ne.s32.totalorder %s142, %s158
      %p160 = scmp.eq.s32.totalorder %s32, 0
      %p161 = por %p159, %p160
      %s163 = sadd.s32 %s162, 1
      %p166 = scmp.eq.s32.totalorder %s26, 1
      %p167 = scmp.ne.s32.totalorder %s162, %s164
      %p168 = scmp.eq.s32.totalorder %s26, 0
      %p169 = por %p167, %p168
      %p170 = scmp.ne.s32.totalorder %s162, %s164
      %p171 = scmp.eq.s32.totalorder %s31, 1
      %p172 = por %p170, %p171
      %p173 = scmp.ne.s32.totalorder %s164, %s165
      %p174 = scmp.eq.s32.totalorder %s31, 0
      %p175 = por %p173, %p174
      %p176 = scmp.ne.s32.totalorder %s164, %s165
      %p177 = scmp.eq.s32.totalorder %s32, 1
      %p178 = por %p176, %p177
      %p180 = scmp.ne.s32.totalorder %s165, %s179
      %p181 = scmp.eq.s32.totalorder %s32, 0
      %p182 = por %p180, %p181
      %s184 = sadd.s32 %s183, 1
      %p187 = scmp.eq.s32.totalorder %s26, 1
      %p188 = scmp.ne.s32.totalorder %s183, %s185
      %p189 = scmp.eq.s32.totalorder %s26, 0
      %p190 = por %p188, %p189
      %p191 = scmp.ne.s32.totalorder %s183, %s185
      %p192 = scmp.eq.s32.totalorder %s31, 1
      %p193 = por %p191, %p192
      %p194 = scmp.ne.s32.totalorder %s185, %s186
      %p195 = scmp.eq.s32.totalorder %s31, 0
      %p196 = por %p194, %p195
      %p197 = scmp.ne.s32.totalorder %s185, %s186
      %p198 = scmp.eq.s32.totalorder %s32, 1
      %p199 = por %p197, %p198
      %p201 = scmp.ne.s32.totalorder %s186, %s200
      %p202 = scmp.eq.s32.totalorder %s32, 0
      %p203 = por %p201, %p202
      %s205 = sadd.s32 %s204, 1
      %p208 = scmp.eq.s32.totalorder %s26, 1
      %p209 = scmp.ne.s32.totalorder %s204, %s206
      %p210 = scmp.eq.s32.totalorder %s26, 0
      %p211 = por %p209, %p210
      %p212 = scmp.ne.s32.totalorder %s204, %s206
      %p213 = scmp.eq.s32.totalorder %s31, 1
      %p214 = por %p212, %p213
      %p215 = scmp.ne.s32.totalorder %s206, %s207
      %p216 = scmp.eq.s32.totalorder %s31, 0
      %p217 = por %p215, %p216
      %p218 = scmp.ne.s32.totalorder %s206, %s207
      %p219 = scmp.eq.s32.totalorder %s32, 1
      %p220 = por %p218, %p219
      %p222 = scmp.ne.s32.totalorder %s207, %s221
      %p223 = scmp.eq.s32.totalorder %s32, 0
      %p224 = por %p222, %p223
      %s226 = sadd.s32 %s225, 1
      %p229 = scmp.eq.s32.totalorder %s26, 1
      %p230 = scmp.ne.s32.totalorder %s225, %s227
      %p231 = scmp.eq.s32.totalorder %s26, 0
      %p232 = por %p230, %p231
      %p233 = scmp.ne.s32.totalorder %s225, %s227
      %p234 = scmp.eq.s32.totalorder %s31, 1
      %p235 = por %p233, %p234
      %p236 = scmp.ne.s32.totalorder %s227, %s228
      %p237 = scmp.eq.s32.totalorder %s31, 0
      %p238 = por %p236, %p237
      %p239 = scmp.ne.s32.totalorder %s227, %s228
      %p240 = scmp.eq.s32.totalorder %s32, 1
      %p241 = por %p239, %p240
      %p243 = scmp.ne.s32.totalorder %s228, %s242
      %p244 = scmp.eq.s32.totalorder %s32, 0
      %p245 = por %p243, %p244
      %s246 = ssub.s32 %s33, %s45
      %s247 = ssub.s32 %s34, %s41
      %s248 = sor.u32 %s246, %s247
      %p249 = scmp.eq.s32.totalorder %s248, 0
      %s251 = sadd.s32 %s250, 1
      %s252 = scalar_select %p249, %s250, %s251
      %p255 = pneg %p249
      %p256 = scmp.eq.s32.totalorder %s26, 1
      %p257 = por %p255, %p256
      %p258 = scmp.ne.s32.totalorder %s250, %s253
      %p259 = scmp.eq.s32.totalorder %s26, 0
      %p260 = por %p258, %p259
      %p261 = scmp.ne.s32.totalorder %s250, %s253
      %p262 = scmp.eq.s32.totalorder %s31, 1
      %p263 = por %p261, %p262
      %p264 = scmp.ne.s32.totalorder %s253, %s254
      %p265 = scmp.eq.s32.totalorder %s31, 0
      %p266 = por %p264, %p265
      %p267 = scmp.ne.s32.totalorder %s253, %s254
      %p268 = scmp.eq.s32.totalorder %s32, 1
      %p269 = por %p267, %p268
      %p271 = scmp.ne.s32.totalorder %s254, %s270
      %p272 = scmp.eq.s32.totalorder %s32, 0
      %p273 = por %p271, %p272
      %p274 = scmp.le.s32.totalorder 1, %s26
      %p275 = scmp.lt.s32.totalorder %s26, 3
      %p276 = pnand %p274, %p275
      %p277 = pneg %p276
      // Predicated region
      $region9: #{tpu_custom_call.1} parent=5 // pred_check
        _
      $region10: #{tpu_custom_call.1} parent=5 // pred_check_branch
        %279 = sbr.rel (%p276) target = $region12
      $region11: #{tpu_custom_call.1} parent=5 // pred_region
        %s280 = ssub.s32 %s26, 1
        // Predicated region
        $region13: #{tpu_custom_call.1} parent=11 // pred_check
          %p281 = pneg %p175
        $region14: #{tpu_custom_call.1} parent=11 // pred_check_branch
          %283 = sbr.rel (%p281) target = $region16
        $region15: #{tpu_custom_call.1} parent=11 // pred_region
          _
        $region16: #{tpu_custom_call.1} parent=11 // pred_fallthru
          _
        // Predicated region
        $region17: #{tpu_custom_call.1} parent=11 // pred_check
          %p284 = pneg %p196
        $region18: #{tpu_custom_call.1} parent=11 // pred_check_branch
          %286 = sbr.rel (%p284) target = $region20
        $region19: #{tpu_custom_call.1} parent=11 // pred_region
          _
        $region20: #{tpu_custom_call.1} parent=11 // pred_fallthru
          _
        // Predicated region
        $region21: #{tpu_custom_call.1} parent=11 // pred_check
          %p287 = pneg %p217
        $region22: #{tpu_custom_call.1} parent=11 // pred_check_branch
          %289 = sbr.rel (%p287) target = $region24
        $region23: #{tpu_custom_call.1} parent=11 // pred_region
          _
        $region24: #{tpu_custom_call.1} parent=11 // pred_fallthru
          _
        // Predicated region
        $region25: #{tpu_custom_call.1} parent=11 // pred_check
          %p290 = pneg %p238
        $region26: #{tpu_custom_call.1} parent=11 // pred_check_branch
          %292 = sbr.rel (%p290) target = $region28
        $region27: #{tpu_custom_call.1} parent=11 // pred_region
          _
        $region28: #{tpu_custom_call.1} parent=11 // pred_fallthru
          _
      $region12: #{tpu_custom_call.1} parent=5 // pred_fallthru
        _
      %p293 = scmp.lt.s32.totalorder %s26, 2
      // Predicated region
      $region29: #{tpu_custom_call.1} parent=5 // pred_check
        %p294 = pneg %p293
      $region30: #{tpu_custom_call.1} parent=5 // pred_check_branch
        %296 = sbr.rel (%p294) target = $region32
      $region31: #{tpu_custom_call.1} parent=5 // pred_region
        // Predicated region
        $region33: #{tpu_custom_call.1} parent=31 // pred_check
          %p297 = pneg %p60
        $region34: #{tpu_custom_call.1} parent=31 // pred_check_branch
          %299 = sbr.rel (%p297) target = $region36
        $region35: #{tpu_custom_call.1} parent=31 // pred_region
          %s300 = sand.u32 %s50, 1
          %s301 = scalar_lea.sflag [#allocation3], %s300
          %s302 = sand.u32 %s50, 1
          %s303 = smul.addr %s302, 8
          %s304 = scalar_lea.vmem [#allocation2], %s303
          %306 = vsyncadd %s301, 0
          %s307 = smul.addr %s33, 2
          %s308 = sadd.s32 %s34, %s307
          %s309 = smul.addr %s308, 8
          %s310 = scalar_lea.hbm %s0, %s309
          %s312 = sshll.u32 %s310, 4
          %s313 = int_to_ptr.hbm [resolvable:$true] %s312
          %s314 = sshll.u32 %s304, 4
          %s315 = int_to_ptr.vmem [resolvable:$true] %s314
          %317 = dma.hbm_to_vmem [thread:$0]  %s313, 128, %s315, %s301
        $region36: #{tpu_custom_call.1} parent=31 // pred_fallthru
          _
        // Predicated region
        $region37: #{tpu_custom_call.1} parent=31 // pred_check
          %p318 = pneg %p90
        $region38: #{tpu_custom_call.1} parent=31 // pred_check_branch
          %320 = sbr.rel (%p318) target = $region40
        $region39: #{tpu_custom_call.1} parent=31 // pred_region
          %s321 = sand.u32 %s26, 1
          %s322 = scalar_lea.sflag [#allocation6], %s321
          %s323 = sand.u32 %s80, 1
          %s324 = smul.addr %s323, 8
          %s325 = scalar_lea.vmem [#allocation5], %s324
          %s326 = sadd.s32 %s34, 1
          %328 = vsyncadd %s322, 0
          %s329 = smul.addr %s33, 2
          %s330 = sadd.s32 %s326, %s329
          %s331 = smul.addr %s330, 8
          %s332 = scalar_lea.hbm %s1, %s331
          %s334 = sshll.u32 %s332, 4
          %s335 = int_to_ptr.hbm [resolvable:$true] %s334
          %s336 = sshll.u32 %s325, 4
          %s337 = int_to_ptr.vmem [resolvable:$true] %s336
          %339 = dma.hbm_to_vmem [thread:$0]  %s335, 128, %s337, %s322
        $region40: #{tpu_custom_call.1} parent=31 // pred_fallthru
          _
        // Predicated region
        $region41: #{tpu_custom_call.1} parent=31 // pred_check
          %p340 = pneg %p118
        $region42: #{tpu_custom_call.1} parent=31 // pred_check_branch
          %342 = sbr.rel (%p340) target = $region44
        $region43: #{tpu_custom_call.1} parent=31 // pred_region
          %s343 = sand.u32 %s26, 1
          %s344 = scalar_lea.sflag [#allocation6], %s343
          %s345 = sand.u32 %s108, 1
          %s346 = smul.addr %s345, 16
          %s347 = scalar_lea.vmem [#allocation7], %s346
          %349 = vsyncadd %s344, 0
          %s350 = smul.addr %s33, 4
          %s351 = sadd.s32 %s34, %s350
          %s352 = smul.addr %s351, 8
          %s353 = scalar_lea.hbm %s2, %s352
          %s354 = sshll.u32 %s353, 4
          %s355 = int_to_ptr.hbm [resolvable:$true] %s354
          %s356 = sshll.u32 %s347, 4
          %s357 = int_to_ptr.vmem [resolvable:$true] %s356
          %362 = dma.hbm_to_vmem [thread:$0]  %s355, 256, %s357, %s344, 256, 128, 8
        $region44: #{tpu_custom_call.1} parent=31 // pred_fallthru
          _
        // Predicated region
        $region45: #{tpu_custom_call.1} parent=31 // pred_check
          %p363 = pneg %p148
        $region46: #{tpu_custom_call.1} parent=31 // pred_check_branch
          %365 = sbr.rel (%p363) target = $region48
        $region47: #{tpu_custom_call.1} parent=31 // pred_region
          %s366 = sand.u32 %s138, 1
          %s367 = scalar_lea.sflag [#allocation9], %s366
          %s368 = sand.u32 %s138, 1
          %s369 = smul.addr %s368, 16
          %s370 = scalar_lea.vmem [#allocation8], %s369
          %s371 = sadd.s32 %s34, 1
          %373 = vsyncadd %s367, 0
          %s374 = smul.addr %s33, 4
          %s375 = sadd.s32 %s371, %s374
          %s376 = smul.addr %s375, 8
          %s377 = scalar_lea.hbm %s3, %s376
          %s378 = sshll.u32 %s377, 4
          %s379 = int_to_ptr.hbm [resolvable:$true] %s378
          %s380 = sshll.u32 %s370, 4
          %s381 = int_to_ptr.vmem [resolvable:$true] %s380
          %386 = dma.hbm_to_vmem [thread:$0]  %s379, 256, %s381, %s367, 256, 128, 8
        $region48: #{tpu_custom_call.1} parent=31 // pred_fallthru
          _
      $region32: #{tpu_custom_call.1} parent=5 // pred_fallthru
        _
      %p387 = scmp.le.s32.totalorder 1, %s26
      %p388 = scmp.lt.s32.totalorder %s26, 3
      %p389 = pnand %p387, %p388
      %p390 = pneg %p389
      // Predicated region
      $region49: #{tpu_custom_call.1} parent=5 // pred_check
        _
      $region50: #{tpu_custom_call.1} parent=5 // pred_check_branch
        %392 = sbr.rel (%p389) target = $region52
      $region51: #{tpu_custom_call.1} parent=5 // pred_region
        %s393 = ssub.s32 %s26, 1
        %s394 = sand.u32 %s53, 1
        %s395 = scalar_lea.sflag [#allocation3], %s394
        %s396 = sand.u32 %s53, 1
        %s397 = smul.addr %s396, 8
        %s398 = scalar_lea.vmem [#allocation2], %s397
        // Predicated region
        $region53: #{tpu_custom_call.1} parent=51 // pred_check
          %p399 = pneg %p66
        $region54: #{tpu_custom_call.1} parent=51 // pred_check_branch
          %401 = sbr.rel (%p399) target = $region56
        $region55: #{tpu_custom_call.1} parent=51 // pred_region
          %403 = dma.done %s395, 128
        $region56: #{tpu_custom_call.1} parent=51 // pred_fallthru
          _
        %s404 = sand.u32 %s31, 1
        %s405 = scalar_lea.sflag [#allocation6], %s404
        %s406 = sand.u32 %s83, 1
        %s407 = smul.addr %s406, 8
        %s408 = scalar_lea.vmem [#allocation5], %s407
        // Predicated region
        $region57: #{tpu_custom_call.1} parent=51 // pred_check
          %p409 = pneg %p96
        $region58: #{tpu_custom_call.1} parent=51 // pred_check_branch
          %411 = sbr.rel (%p409) target = $region60
        $region59: #{tpu_custom_call.1} parent=51 // pred_region
          %413 = dma.done %s405, 128
        $region60: #{tpu_custom_call.1} parent=51 // pred_fallthru
          _
        %s414 = sand.u32 %s31, 1
        %s415 = scalar_lea.sflag [#allocation6], %s414
        %s416 = sand.u32 %s111, 1
        %s417 = smul.addr %s416, 16
        %s418 = scalar_lea.vmem [#allocation7], %s417
        // Predicated region
        $region61: #{tpu_custom_call.1} parent=51 // pred_check
          %p419 = pneg %p124
        $region62: #{tpu_custom_call.1} parent=51 // pred_check_branch
          %421 = sbr.rel (%p419) target = $region64
        $region63: #{tpu_custom_call.1} parent=51 // pred_region
          %423 = dma.done %s415, 256
        $region64: #{tpu_custom_call.1} parent=51 // pred_fallthru
          _
        %s424 = sand.u32 %s141, 1
        %s425 = scalar_lea.sflag [#allocation9], %s424
        %s426 = sand.u32 %s141, 1
        %s427 = smul.addr %s426, 16
        %s428 = scalar_lea.vmem [#allocation8], %s427
        // Predicated region
        $region65: #{tpu_custom_call.1} parent=51 // pred_check
          %p429 = pneg %p154
        $region66: #{tpu_custom_call.1} parent=51 // pred_check_branch
          %431 = sbr.rel (%p429) target = $region68
        $region67: #{tpu_custom_call.1} parent=51 // pred_region
          %433 = dma.done %s425, 256
        $region68: #{tpu_custom_call.1} parent=51 // pred_fallthru
          _
        %s434 = sand.u32 %s53, 1
        %s435 = scalar_lea.sflag [#allocation3], %s434
        %s436 = sand.u32 %s53, 1
        %s437 = smul.addr %s436, 8
        %s438 = scalar_lea.vmem [#allocation2], %s437
        %p439 = pneg %p66
        %p440 = pneg %p63
        %s441 = sand.u32 %s31, 1
        %s442 = scalar_lea.sflag [#allocation6], %s441
        %s443 = sand.u32 %s83, 1
        %s444 = smul.addr %s443, 8
        %s445 = scalar_lea.vmem [#allocation5], %s444
        %p446 = pneg %p96
        %p447 = pneg %p93
        %s448 = sand.u32 %s31, 1
        %s449 = scalar_lea.sflag [#allocation6], %s448
        %s450 = sand.u32 %s111, 1
        %s451 = smul.addr %s450, 16
        %s452 = scalar_lea.vmem [#allocation7], %s451
        %p453 = pneg %p124
        %p454 = pneg %p121
        %s455 = sand.u32 %s141, 1
        %s456 = scalar_lea.sflag [#allocation9], %s455
        %s457 = sand.u32 %s141, 1
        %s458 = smul.addr %s457, 16
        %s459 = scalar_lea.vmem [#allocation8], %s458
        %p460 = pneg %p154
        %p461 = pneg %p151
        %p462 = pneg %p175
        %p463 = pneg %p172
        %p464 = pneg %p196
        %p465 = pneg %p193
        %p466 = pneg %p217
        %p467 = pneg %p214
        %p468 = pneg %p238
        %p469 = pneg %p235
        %p470 = pneg %p266
        %p471 = pneg %p263
        %s472 = sand.u32 %s253, 1
        %s473 = scalar_lea.sflag [#allocation4], %s472
        %s474 = sand.u32 %s253, 1
        %s475 = smul.addr %s474, 16
        %s476 = scalar_lea.vmem [#allocation10], %s475
        %s477 = sadd.s32 %s36, 1
        %s478 = sadd.s32 %s36, 1
        %v480 = vld [vmem:[%s398] sm:$0xff]
        %v481 = vld [vmem:[%s408] sm:$0xff]
        %484 = vrot.lane.b32.xlu0 %v480, 127
        %v485 = vpop.permute.xlu0 %484
        %486 = vrot.lane.b32.xlu0 %v481, 127
        %v487 = vpop.permute.xlu0 %486
        %vm488 = vcmask 1039360
        %v489 = vsel %vm488, %v485, %v487
        %492 = vrot.lane.b32.xlu0 %v480, 126
        %v493 = vpop.permute.xlu0 %492
        %494 = vrot.lane.b32.xlu0 %v481, 126
        %v495 = vpop.permute.xlu0 %494
        %vm496 = vcmask 1031168
        %v497 = vsel %vm496, %v493, %v495
        %500 = vrot.lane.b32.xlu0 %v480, 125
        %v501 = vpop.permute.xlu0 %500
        %502 = vrot.lane.b32.xlu0 %v481, 125
        %v503 = vpop.permute.xlu0 %502
        %vm504 = vcmask 1022976
        %v505 = vsel %vm504, %v501, %v503
        %508 = vrot.lane.b32.xlu0 %v480, 124
        %v509 = vpop.permute.xlu0 %508
        %510 = vrot.lane.b32.xlu0 %v481, 124
        %v511 = vpop.permute.xlu0 %510
        %vm512 = vcmask 1014784
        %v513 = vsel %vm512, %v509, %v511
        %516 = vrot.lane.b32.xlu0 %v480, 123
        %v517 = vpop.permute.xlu0 %516
        %518 = vrot.lane.b32.xlu0 %v481, 123
        %v519 = vpop.permute.xlu0 %518
        %vm520 = vcmask 1006592
        %v521 = vsel %vm520, %v517, %v519
        %524 = vrot.lane.b32.xlu0 %v480, 122
        %v525 = vpop.permute.xlu0 %524
        %526 = vrot.lane.b32.xlu0 %v481, 122
        %v527 = vpop.permute.xlu0 %526
        %vm528 = vcmask 998400
        %v529 = vsel %vm528, %v525, %v527
        %532 = vrot.lane.b32.xlu0 %v480, 121
        %v533 = vpop.permute.xlu0 %532
        %534 = vrot.lane.b32.xlu0 %v481, 121
        %v535 = vpop.permute.xlu0 %534
        %vm536 = vcmask 990208
        %v537 = vsel %vm536, %v533, %v535
        %540 = vrot.lane.b32.xlu0 %v480, 120
        %v541 = vpop.permute.xlu0 %540
        %542 = vrot.lane.b32.xlu0 %v481, 120
        %v543 = vpop.permute.xlu0 %542
        %vm544 = vcmask 982016
        %v545 = vsel %vm544, %v541, %v543
        %548 = vrot.lane.b32.xlu0 %v480, 119
        %v549 = vpop.permute.xlu0 %548
        %550 = vrot.lane.b32.xlu0 %v481, 119
        %v551 = vpop.permute.xlu0 %550
        %vm552 = vcmask 973824
        %v553 = vsel %vm552, %v549, %v551
        %v556 = vld [vmem:[%s4] sm:$0xf]
        %v557 = vld [vmem:[%s4 + $0x4] sm:$0xf]
        %v558 = vpack.c.bf16 %v489, %v480
        %v559 = vpack.c.bf16 %v487, %v481
        %v560 = vpack.c.bf16 %v505, %v497
        %v561 = vpack.c.bf16 %v503, %v495
        %v562 = vpack.c.bf16 %v521, %v513
        %v563 = vpack.c.bf16 %v519, %v511
        %v564 = vpack.c.bf16 %v537, %v529
        %v565 = vpack.c.bf16 %v535, %v527
        %v566 = vpack.c.bf16 %v553, %v545
        %v567 = vpack.c.bf16 %v551, %v543
        %v568 = vld [vmem:[%s5] sm:$0xff]
        %v569 = vld [vmem:[%s5 + $0x8] sm:$0xff]
        %571 = vset.pattern.permute.xlu0 0
        %572 = vperm.xlu0 %571, %v568
        %v573 = vpop.permute.xlu0 %572
        %576 = vset.pattern.permute.xlu0 0
        %577 = vperm.xlu0 %576, %v569
        %v578 = vpop.permute.xlu0 %577
        %v582 = vunpack.c.l.b16 %v556
        %v583 = vunpack.c.l.b16 %v557
        %v584 = vpack.c.b16 %v583, %v582
        %vm585 = vcmask 654336
        %v587 = vsel %vm585, %v584, 0
        %589 = vmatpush.bf16.msra.mxu0 0
        %590 = vmatpush.bf16.msra.mxu0 0
        %591 = vmatpush.bf16.msra.mxu0 0
        %592 = vmatpush.bf16.msra.mxu0 %v566
        %593 = vmatpush.bf16.msra.mxu0 %v564
        %594 = vmatpush.bf16.msra.mxu0 %v562
        %595 = vmatpush.bf16.msra.mxu0 %v560
        %596 = vmatpush.bf16.msra.mxu0 %v558
        %597 = vmatmul.bf16.gmra.mxu0 %v587
        %v598 = vpop.f32.mrf.mxu0
        %v599 = vadd.f32 %v573, %v598
        %v600 = vpop.f32.mrf.mxu0
        %v601 = vadd.f32 %v578, %v600
        %602 = vdwg.mxu0
        %603 = vmatpush.bf16.msra.mxu0 0
        %604 = vmatpush.bf16.msra.mxu0 0
        %605 = vmatpush.bf16.msra.mxu0 0
        %606 = vmatpush.bf16.msra.mxu0 %v567
        %607 = vmatpush.bf16.msra.mxu0 %v565
        %608 = vmatpush.bf16.msra.mxu0 %v563
        %609 = vmatpush.bf16.msra.mxu0 %v561
        %610 = vmatpush.bf16.msra.mxu0 %v559
        %611 = vmatmul.bf16.gmra.mxu0 %v587
        %v612 = vpop.f32.mrf.mxu0
        %v613 = vadd.f32 %v573, %v612
        %v614 = vpop.f32.mrf.mxu0
        %v615 = vadd.f32 %v578, %v614
        %616 = vdwg.mxu0
        %v617 = vmul.f32 %v599, 0.01
        %v618 = vmul.f32 %v613, 0.01
        %v619 = vmul.f32 %v601, 0.01
        %v620 = vmul.f32 %v615, 0.01
        %v621 = vmax.f32 %v599, %v617
        %v622 = vmax.f32 %v613, %v618
        %v623 = vmax.f32 %v601, %v619
        %v624 = vmax.f32 %v615, %v620
        %v625 = vld [vmem:[%s418] sm:$0xff]
        %v626 = vld [vmem:[%s418 + $0x8] sm:$0xff]
        %v627 = vld [vmem:[%s428] sm:$0xff]
        %v628 = vld [vmem:[%s428 + $0x8] sm:$0xff]
        %631 = vrot.lane.b32.xlu0 %v625, 127
        %v632 = vpop.permute.xlu0 %631
        %633 = vrot.lane.b32.xlu0 %v627, 127
        %v634 = vpop.permute.xlu0 %633
        %v635 = vsel %vm488, %v632, %v634
        %639 = vrot.lane.b32.xlu0 %v621, 127
        %v640 = vpop.permute.xlu0 %639
        %641 = vrot.lane.b32.xlu0 %v622, 127
        %v642 = vpop.permute.xlu0 %641
        %v643 = vsel %vm488, %v640, %v642
        %647 = vrot.lane.b32.xlu0 %v626, 127
        %v648 = vpop.permute.xlu0 %647
        %649 = vrot.lane.b32.xlu0 %v628, 127
        %v650 = vpop.permute.xlu0 %649
        %v651 = vsel %vm488, %v648, %v650
        %655 = vrot.lane.b32.xlu0 %v623, 127
        %v656 = vpop.permute.xlu0 %655
        %657 = vrot.lane.b32.xlu0 %v624, 127
        %v658 = vpop.permute.xlu0 %657
        %v659 = vsel %vm488, %v656, %v658
        %661 = vrot.lane.b32.xlu0 %v625, 126
        %v662 = vpop.permute.xlu0 %661
        %663 = vrot.lane.b32.xlu0 %v627, 126
        %v664 = vpop.permute.xlu0 %663
        %v665 = vsel %vm496, %v662, %v664
        %667 = vrot.lane.b32.xlu0 %v621, 126
        %v668 = vpop.permute.xlu0 %667
        %669 = vrot.lane.b32.xlu0 %v622, 126
        %v670 = vpop.permute.xlu0 %669
        %v671 = vsel %vm496, %v668, %v670
        %673 = vrot.lane.b32.xlu0 %v626, 126
        %v674 = vpop.permute.xlu0 %673
        %675 = vrot.lane.b32.xlu0 %v628, 126
        %v676 = vpop.permute.xlu0 %675
        %v677 = vsel %vm496, %v674, %v676
        %679 = vrot.lane.b32.xlu0 %v623, 126
        %v680 = vpop.permute.xlu0 %679
        %681 = vrot.lane.b32.xlu0 %v624, 126
        %v682 = vpop.permute.xlu0 %681
        %v683 = vsel %vm496, %v680, %v682
        %v685 = vld [vmem:[%s6] sm:$0xf]
        %v686 = vpack.c.bf16 %v621, %v625
        %v687 = vpack.c.bf16 %v623, %v626
        %v688 = vpack.c.bf16 %v643, %v635
        %v689 = vpack.c.bf16 %v659, %v651
        %v690 = vpack.c.bf16 %v671, %v665
        %v691 = vpack.c.bf16 %v683, %v677
        %v692 = vld [vmem:[%s7] sm:$0xff]
        %694 = vset.pattern.permute.xlu0 0
        %695 = vperm.xlu0 %694, %v692
        %v696 = vpop.permute.xlu0 %695
        %v699 = vsel %vm585, %v685, 0
        %701 = vmatpush.bf16.msra.mxu0 0
        %702 = vmatpush.bf16.msra.mxu0 0
        %703 = vmatpush.bf16.msra.mxu0 0
        %704 = vmatpush.bf16.msra.mxu0 %v690
        %705 = vmatpush.bf16.msra.mxu0 %v689
        %706 = vmatpush.bf16.msra.mxu0 %v688
        %707 = vmatpush.bf16.msra.mxu0 %v687
        %708 = vmatpush.bf16.msra.mxu0 %v686
        %709 = vmatmul.bf16.gmra.mxu0 %v699
        %v710 = vpop.f32.mrf.mxu0
        %v711 = vadd.f32 %v696, %v710
        %v712 = vpop.f32.mrf.mxu0
        %713 = vdwg.mxu0
        %714 = vmatpush.bf16.msra.mxu0 0
        %715 = vmatpush.bf16.msra.mxu0 0
        %716 = vmatpush.bf16.msra.mxu0 0
        %717 = vmatpush.bf16.msra.mxu0 %v691
        %718 = vmatpush.bf16.msra.mxu0 %v690
        %719 = vmatpush.bf16.msra.mxu0 %v689
        %720 = vmatpush.bf16.msra.mxu0 %v688
        %721 = vmatpush.bf16.msra.mxu0 %v687
        %722 = vmatmul.bf16.gmra.mxu0 %v699
        %v723 = vpop.f32.mrf.mxu0
        %v724 = vadd.f32 %v696, %v723
        %v725 = vpop.f32.mrf.mxu0
        %726 = vdwg.mxu0
        %v727 = vmul.f32 %v711, 0.01
        %v728 = vmul.f32 %v724, 0.01
        %v729 = vmax.f32 %v711, %v727
        %v730 = vmax.f32 %v724, %v728
        %731 = vst [vmem:[%s476] sm:$0xff] %v729
        %s732 = scalar_lea.vmem %s476, 8 [#allocation10]
        %733 = vst [vmem:[%s732] sm:$0xff] %v730
        %s734 = sand.u32 %s253, 1
        %s735 = scalar_lea.sflag [#allocation4], %s734
        %s736 = sand.u32 %s253, 1
        %s737 = smul.addr %s736, 16
        %s738 = scalar_lea.vmem [#allocation10], %s737
        // Predicated region
        $region69: #{tpu_custom_call.1} parent=51 // pred_check
          %p739 = pneg %p263
        $region70: #{tpu_custom_call.1} parent=51 // pred_check_branch
          %741 = sbr.rel (%p739) target = $region72
        $region71: #{tpu_custom_call.1} parent=51 // pred_region
          %743 = vsyncadd %s735, 0
          %s744 = smul.addr %s35, 2
          %s745 = sadd.s32 %s36, %s744
          %s746 = smul.addr %s745, 8
          %s747 = scalar_lea.hbm %s8, %s746
          %s748 = sshll.u32 %s738, 4
          %s749 = int_to_ptr.vmem [resolvable:$true] %s748
          %s750 = sshll.u32 %s747, 4
          %s751 = int_to_ptr.hbm [resolvable:$true] %s750
          %756 = dma.vmem_to_hbm [thread:$0]  %s749, 256, %s751, %s735, 128, 128, 8
        $region72: #{tpu_custom_call.1} parent=51 // pred_fallthru
          _
      $region52: #{tpu_custom_call.1} parent=5 // pred_fallthru
        _
      %p757 = scmp.le.s32.totalorder 2, %s26
      // Predicated region
      $region73: #{tpu_custom_call.1} parent=5 // pred_check
        %p758 = pneg %p757
      $region74: #{tpu_custom_call.1} parent=5 // pred_check_branch
        %760 = sbr.rel (%p758) target = $region76
      $region75: #{tpu_custom_call.1} parent=5 // pred_region
        %s761 = ssub.s32 %s26, 2
        // Predicated region
        $region77: #{tpu_custom_call.1} parent=75 // pred_check
          %p762 = pneg %p269
        $region78: #{tpu_custom_call.1} parent=75 // pred_check_branch
          %764 = sbr.rel (%p762) target = $region80
        $region79: #{tpu_custom_call.1} parent=75 // pred_region
          %s765 = sand.u32 %s254, 1
          %s766 = scalar_lea.sflag [#allocation4], %s765
          %s767 = sand.u32 %s254, 1
          %s768 = smul.addr %s767, 16
          %s769 = scalar_lea.vmem [#allocation10], %s768
          %771 = dma.done %s766, 256
        $region80: #{tpu_custom_call.1} parent=75 // pred_fallthru
          _
      $region76: #{tpu_custom_call.1} parent=5 // pred_fallthru
        _
    $region6: #{tpu_custom_call.1} parent=1 // loop_footer
      %s30 = sadd.s32 1, %s26
    $region7: #{tpu_custom_call.1} parent=1 // loop_footer_branch
      %25 = sbr.rel target = $region3
    $region8: #{tpu_custom_call.1} parent=1 // loop_exit
      _
    %772 = vsyncpa [#allocation3], 1
    %s773 = scalar_lea.sflag [#allocation3], 1
    %774 = vsyncpa %s773, 1
    %775 = vsyncpa [#allocation6], 1
    %s776 = scalar_lea.sflag [#allocation6], 1
    %777 = vsyncpa %s776, 1
    %778 = vsyncpa [#allocation9], 1
    %s779 = scalar_lea.sflag [#allocation9], 1
    %780 = vsyncpa %s779, 1
    %781 = vsyncpa [#allocation4], 1
    %s782 = scalar_lea.sflag [#allocation4], 1
    %783 = vsyncpa %s782, 1

</llo_original>
